<compile_context>
chip_gen: v6e
topology: v6e:2x2x1
jax: 0.10.0
libtpu: 0.0.40
codegen_flags: <defaults>
</compile_context>

<pallas_src>
import functools

import jax
import jax.numpy as jnp
from jax import lax
from jax.experimental import pallas as pl
from jax.experimental.pallas import tpu as pltpu


def mbblock_kernel(x_ref, mask_ref, w1_ref, b1_ref, w2_ref, b2_ref,
                   w3_ref, b3_ref, o_ref, *, HWp, W, K, Nb, residual,
                   mxu1, mxu3):
    """One grid step: x_ref (Cin, Nb*HWp); process Nb lane-padded images."""
    Cin = x_ref.shape[0]
    Cmid = w1_ref.shape[0]
    pad = (K - 1) // 2

    # Grid-invariant loads (tiny), done once per grid step.
    w1 = w1_ref[...]            # (Cmid, Cin)
    b1 = b1_ref[...]            # (Cmid, 1)
    w2 = w2_ref[...]            # (Cmid, K*K)
    b2 = b2_ref[...]            # (Cmid, 1)
    w3 = w3_ref[...]            # (Cout, Cmid)
    b3 = b3_ref[...]            # (Cout, 1)
    mask = mask_ref[...]        # (K*K, HWp), f32 {0,1}

    # Hoist per-tap slices out of the chunk loop.
    taps = []
    for kh in range(K):
        for kw in range(K):
            t = kh * K + kw
            s = (kh - pad) * W + (kw - pad)
            taps.append((s, mask[t:t + 1, :], w2[:, t:t + 1]))

    def mac_tree(w_mat, x, bias, use_mxu):
        # out[o, p] = bias[o] + sum_c w_mat[o, c] * x[c, p]
        if use_mxu:
            return jnp.dot(w_mat, x, preferred_element_type=jnp.float32) + bias
        Ci = x.shape[0]
        terms = [bias] + [w_mat[:, c:c + 1] * x[c:c + 1, :] for c in range(Ci)]
        while len(terms) > 1:                      # pairwise reduction tree
            nxt = [terms[i] + terms[i + 1] for i in range(0, len(terms) - 1, 2)]
            if len(terms) % 2 == 1:
                nxt.append(terms[-1])
            terms = nxt
        return terms[0]

    for n in range(Nb):                            # chunk = one padded image
        lo = n * HWp
        xc = x_ref[:, lo:lo + HWp]                 # (Cin, HWp)

        # ---- conv1: 1x1 (BN scale folded into w1) + bias + ReLU ----
        t1 = jnp.maximum(mac_tree(w1, xc, b1, mxu1), 0.0)      # (Cmid, HWp)

        # ---- conv2: depthwise KxK (stride 1, dil 1) via chunk-local rolls ----
        acc = None
        for s, mrow, wcol in taps:
            shifted = t1 if s == 0 else pltpu.roll(t1, shift=(-s) % HWp, axis=1)
            term = (shifted * mrow) * wcol
            acc = term if acc is None else acc + term
        t2 = jnp.maximum(acc + b2, 0.0)                        # (Cmid, HWp)

        # ---- conv3: 1x1 (BN scale folded), bias, no ReLU ----
        t3 = mac_tree(w3, t2, b3, mxu3)                        # (Cout, HWp)

        # ---- residual (in_channels == out_channels, stride == 1) ----
        if residual:
            t3 = t3 + xc
        o_ref[:, lo:lo + HWp] = t3


def mbblock_forward(x, params):
    """x: (N, Cin, H, W) NCHW, same layout as the PyTorch module."""
    (w1, s1, b1, w2, s2, b2, w3, s3, b3) = params
    N, Cin, H, W = x.shape
    K = w2.shape[0]
    Cmid = w1.shape[1]
    Cout = w3.shape[1]
    HW = H * W
    residual = (Cin == Cout)            # stride == 1 in this config

    # Fold inference-BN scales into the conv weights; only bias adds in-kernel.
    w1f = (w1 * s1).T.astype(jnp.float32)                              # (Cmid, Cin)
    w2f = (w2 * s2.reshape(1, 1, Cmid)).reshape(K * K, Cmid).T.astype(jnp.float32)
    w3f = (w3 * s3).T.astype(jnp.float32)                              # (Cout, Cmid)
    b1f = b1.reshape(Cmid, 1).astype(jnp.float32)
    b2f = b2.reshape(Cmid, 1).astype(jnp.float32)
    b3f = b3.reshape(Cout, 1).astype(jnp.float32)

    # Lane-pad each image to a multiple of 128 so every block obeys (8,128)
    # and output stores are unmasked lane-dense vst.
    HWp = ((HW + 127) // 128) * 128
    pad_k = (K - 1) // 2

    # Precompute the K*K depthwise validity masks once in the wrapper.
    pos = jnp.arange(HWp)
    hh = pos // W
    ww = pos % W
    in_img = pos < HW
    rows = []
    for kh in range(K):
        for kw in range(K):
            dh, dw = kh - pad_k, kw - pad_k
            rows.append(in_img & (hh + dh >= 0) & (hh + dh < H)
                        & (ww + dw >= 0) & (ww + dw < W))
    mask = jnp.stack(rows).astype(jnp.float32)                         # (K*K, HWp)

    # Images per grid step: keep lane blocks modest and ensure >= 2 (ideally
    # >= 4) grid steps so DMA pipelines and v7x megacore can shard.
    nb_lanes = max(1, 2048 // HWp)
    nb_grid = max(1, N // 4) if N >= 2 else 1
    Nb = max(1, min(nb_lanes, nb_grid))
    Np = ((N + Nb - 1) // Nb) * Nb
    num_blocks = Np // Nb
    Lb = Nb * HWp

    # Channels-first, image-blocked, lane-dense layout: (C, Np * HWp).
    x_cl = x.transpose(1, 0, 2, 3).reshape(Cin, N, HW)
    x_cl = jnp.pad(x_cl, ((0, 0), (0, Np - N), (0, HWp - HW)))
    x_cl = x_cl.reshape(Cin, Np * HWp).astype(jnp.float32)

    # MXU for the 1x1 convs only when contraction dims are big enough.
    mxu1 = Cin >= 32
    mxu3 = Cmid >= 32

    out_cl = pl.pallas_call(
        functools.partial(mbblock_kernel, HWp=HWp, W=W, K=K, Nb=Nb,
                          residual=residual, mxu1=mxu1, mxu3=mxu3),
        out_shape=jax.ShapeDtypeStruct((Cout, Np * HWp), jnp.float32),
        grid_spec=pltpu.PrefetchScalarGridSpec(
            num_scalar_prefetch=0,
            grid=(num_blocks,),
            in_specs=[
                pl.BlockSpec((Cin, Lb), lambda i: (0, i)),
                pl.BlockSpec((K * K, HWp), lambda i: (0, 0)),
                pl.BlockSpec((Cmid, Cin), lambda i: (0, 0)),
                pl.BlockSpec((Cmid, 1), lambda i: (0, 0)),
                pl.BlockSpec((Cmid, K * K), lambda i: (0, 0)),
                pl.BlockSpec((Cmid, 1), lambda i: (0, 0)),
                pl.BlockSpec((Cout, Cmid), lambda i: (0, 0)),
                pl.BlockSpec((Cout, 1), lambda i: (0, 0)),
            ],
            out_specs=pl.BlockSpec((Cout, Lb), lambda i: (0, i)),
        ),
        compiler_params=pltpu.CompilerParams(
            dimension_semantics=("parallel",)),
    )(x_cl, mask, w1f, b1f, w2f, b2f, w3f, b3f)

    out = out_cl.reshape(Cout, Np, HWp)[:, :N, :HW]
    return out.reshape(Cout, N, H, W).transpose(1, 0, 2, 3)


def mbblock_reference(x, params):
    """Pure-JAX reference (NCHW), mirrors the PyTorch module in inference mode."""
    (w1, s1, b1, w2, s2, b2, w3, s3, b3) = params
    K = w2.shape[0]
    Cmid = w1.shape[1]
    Cout = w3.shape[1]
    pad = (K - 1) // 2

    t = jnp.einsum('nchw,cd->ndhw', x, w1)
    t = jax.nn.relu(t * s1.reshape(1, Cmid, 1, 1) + b1.reshape(1, Cmid, 1, 1))
    dw = lax.conv_general_dilated(
        t, w2.reshape(K, K, 1, Cmid),
        window_strides=(1, 1), padding=((pad, pad), (pad, pad)),
        feature_group_count=Cmid,
        dimension_numbers=('NCHW', 'HWIO', 'NCHW'))
    dw = jax.nn.relu(dw * s2.reshape(1, Cmid, 1, 1) + b2.reshape(1, Cmid, 1, 1))
    t3 = jnp.einsum('nchw,cd->ndhw', dw, w3)
    t3 = t3 * s3.reshape(1, Cout, 1, 1) + b3.reshape(1, Cout, 1, 1)
    if x.shape[1] == Cout:
        t3 = t3 + x
    return t3


if __name__ == "__main__":
    # MBBlock(input_size=16, in_channels=4, out_channels=4, expansion=2,
    #         stride=1, kernel_size=3) — NCHW input like the PyTorch module.
    N, H, W = 2, 16, 16
    Cin, Cout, expansion, K = 4, 4, 2, 3
    Cmid = Cin * expansion

    key = jax.random.PRNGKey(0)
    keys = jax.random.split(key, 10)

    x = jax.random.normal(keys[0], (N, Cin, H, W), jnp.float32)

    # conv weights (kaiming-ish scaled normals); BN folded to scale/bias.
    w1 = jax.random.normal(keys[1], (Cin, Cmid), jnp.float32) * (2.0 / Cmid) ** 0.5
    w2 = jax.random.normal(keys[2], (K, K, Cmid), jnp.float32) * (2.0 / (K * K)) ** 0.5
    w3 = jax.random.normal(keys[3], (Cmid, Cout), jnp.float32) * (2.0 / Cout) ** 0.5
    s1 = 1.0 + 0.1 * jax.random.normal(keys[4], (1, Cmid), jnp.float32)
    b1 = 0.1 * jax.random.normal(keys[5], (1, Cmid), jnp.float32)
    s2 = 1.0 + 0.1 * jax.random.normal(keys[6], (1, Cmid), jnp.float32)
    b2 = 0.1 * jax.random.normal(keys[7], (1, Cmid), jnp.float32)
    s3 = 1.0 + 0.1 * jax.random.normal(keys[8], (1, Cout), jnp.float32)
    b3 = 0.1 * jax.random.normal(keys[9], (1, Cout), jnp.float32)

    params = (w1, s1, b1, w2, s2, b2, w3, s3, b3)

    out = mbblock_forward(x, params)
    out = jax.block_until_ready(out)

    ref = mbblock_reference(x, params)
    assert out.shape == (N, Cout, H, W)
    assert jnp.allclose(out, ref, atol=1e-4, rtol=1e-4), \
        f"max abs err = {jnp.max(jnp.abs(out - ref))}"

    print("KERNEL_OK")
</pallas_src>

<mosaic_0001>
module attributes {stable_mosaic.version = 11 : i64} {
  func.func @mbblock_kernel(%arg0: i32, %arg1: memref<4x256xf32, #tpu.memory_space<vmem>>, %arg2: memref<9x256xf32, #tpu.memory_space<vmem>>, %arg3: memref<8x4xf32, #tpu.memory_space<vmem>>, %arg4: memref<8x1xf32, #tpu.memory_space<vmem>>, %arg5: memref<8x9xf32, #tpu.memory_space<vmem>>, %arg6: memref<8x1xf32, #tpu.memory_space<vmem>>, %arg7: memref<4x8xf32, #tpu.memory_space<vmem>>, %arg8: memref<4x1xf32, #tpu.memory_space<vmem>>, %arg9: memref<4x256xf32, #tpu.memory_space<vmem>>) attributes {dimension_semantics = [#tpu.dimension_semantics<parallel>], iteration_bounds = array<i64: 2>, scalar_prefetch = 0 : i64, scratch_operands = 0 : i64, tpu.core_type = #tpu.core_type<tc>, window_params = [{transform_indices = @transform_0, window_bounds = array<i64: 4, 256>}, {pipeline_mode = #tpu.pipeline_mode<synchronous>, transform_indices = @transform_1, window_bounds = array<i64: 9, 256>}, {pipeline_mode = #tpu.pipeline_mode<synchronous>, transform_indices = @transform_2, window_bounds = array<i64: 8, 4>}, {pipeline_mode = #tpu.pipeline_mode<synchronous>, transform_indices = @transform_3, window_bounds = array<i64: 8, 1>}, {pipeline_mode = #tpu.pipeline_mode<synchronous>, transform_indices = @transform_4, window_bounds = array<i64: 8, 9>}, {pipeline_mode = #tpu.pipeline_mode<synchronous>, transform_indices = @transform_5, window_bounds = array<i64: 8, 1>}, {pipeline_mode = #tpu.pipeline_mode<synchronous>, transform_indices = @transform_6, window_bounds = array<i64: 4, 8>}, {pipeline_mode = #tpu.pipeline_mode<synchronous>, transform_indices = @transform_7, window_bounds = array<i64: 4, 1>}, {transform_indices = @transform_8, window_bounds = array<i64: 4, 256>}]} {
    %c0 = arith.constant 0 : index
    %c0_0 = arith.constant 0 : index
    %0 = vector.load %arg3[%c0, %c0_0] : memref<8x4xf32, #tpu.memory_space<vmem>>, vector<8x4xf32>
    %c0_1 = arith.constant 0 : index
    %c0_2 = arith.constant 0 : index
    %1 = vector.load %arg4[%c0_1, %c0_2] : memref<8x1xf32, #tpu.memory_space<vmem>>, vector<8x1xf32>
    %c0_3 = arith.constant 0 : index
    %c0_4 = arith.constant 0 : index
    %2 = vector.load %arg5[%c0_3, %c0_4] : memref<8x9xf32, #tpu.memory_space<vmem>>, vector<8x9xf32>
    %c0_5 = arith.constant 0 : index
    %c0_6 = arith.constant 0 : index
    %3 = vector.load %arg6[%c0_5, %c0_6] : memref<8x1xf32, #tpu.memory_space<vmem>>, vector<8x1xf32>
    %c0_7 = arith.constant 0 : index
    %c0_8 = arith.constant 0 : index
    %4 = vector.load %arg7[%c0_7, %c0_8] : memref<4x8xf32, #tpu.memory_space<vmem>>, vector<4x8xf32>
    %c0_9 = arith.constant 0 : index
    %c0_10 = arith.constant 0 : index
    %5 = vector.load %arg8[%c0_9, %c0_10] : memref<4x1xf32, #tpu.memory_space<vmem>>, vector<4x1xf32>
    %c0_11 = arith.constant 0 : index
    %c0_12 = arith.constant 0 : index
    %6 = vector.load %arg2[%c0_11, %c0_12] : memref<9x256xf32, #tpu.memory_space<vmem>>, vector<9x256xf32>
    %7 = vector.extract_strided_slice %6 {offsets = [0, 0], sizes = [1, 256], strides = [1, 1]} : vector<9x256xf32> to vector<1x256xf32>
    %8 = vector.extract_strided_slice %2 {offsets = [0, 0], sizes = [8, 1], strides = [1, 1]} : vector<8x9xf32> to vector<8x1xf32>
    %9 = vector.extract_strided_slice %6 {offsets = [1, 0], sizes = [1, 256], strides = [1, 1]} : vector<9x256xf32> to vector<1x256xf32>
    %10 = vector.extract_strided_slice %2 {offsets = [0, 1], sizes = [8, 1], strides = [1, 1]} : vector<8x9xf32> to vector<8x1xf32>
    %11 = vector.extract_strided_slice %6 {offsets = [2, 0], sizes = [1, 256], strides = [1, 1]} : vector<9x256xf32> to vector<1x256xf32>
    %12 = vector.extract_strided_slice %2 {offsets = [0, 2], sizes = [8, 1], strides = [1, 1]} : vector<8x9xf32> to vector<8x1xf32>
    %13 = vector.extract_strided_slice %6 {offsets = [3, 0], sizes = [1, 256], strides = [1, 1]} : vector<9x256xf32> to vector<1x256xf32>
    %14 = vector.extract_strided_slice %2 {offsets = [0, 3], sizes = [8, 1], strides = [1, 1]} : vector<8x9xf32> to vector<8x1xf32>
    %15 = vector.extract_strided_slice %6 {offsets = [4, 0], sizes = [1, 256], strides = [1, 1]} : vector<9x256xf32> to vector<1x256xf32>
    %16 = vector.extract_strided_slice %2 {offsets = [0, 4], sizes = [8, 1], strides = [1, 1]} : vector<8x9xf32> to vector<8x1xf32>
    %17 = vector.extract_strided_slice %6 {offsets = [5, 0], sizes = [1, 256], strides = [1, 1]} : vector<9x256xf32> to vector<1x256xf32>
    %18 = vector.extract_strided_slice %2 {offsets = [0, 5], sizes = [8, 1], strides = [1, 1]} : vector<8x9xf32> to vector<8x1xf32>
    %19 = vector.extract_strided_slice %6 {offsets = [6, 0], sizes = [1, 256], strides = [1, 1]} : vector<9x256xf32> to vector<1x256xf32>
    %20 = vector.extract_strided_slice %2 {offsets = [0, 6], sizes = [8, 1], strides = [1, 1]} : vector<8x9xf32> to vector<8x1xf32>
    %21 = vector.extract_strided_slice %6 {offsets = [7, 0], sizes = [1, 256], strides = [1, 1]} : vector<9x256xf32> to vector<1x256xf32>
    %22 = vector.extract_strided_slice %2 {offsets = [0, 7], sizes = [8, 1], strides = [1, 1]} : vector<8x9xf32> to vector<8x1xf32>
    %23 = vector.extract_strided_slice %6 {offsets = [8, 0], sizes = [1, 256], strides = [1, 1]} : vector<9x256xf32> to vector<1x256xf32>
    %24 = vector.extract_strided_slice %2 {offsets = [0, 8], sizes = [8, 1], strides = [1, 1]} : vector<8x9xf32> to vector<8x1xf32>
    %c0_13 = arith.constant 0 : index
    %c0_14 = arith.constant 0 : index
    %25 = vector.load %arg1[%c0_13, %c0_14] : memref<4x256xf32, #tpu.memory_space<vmem>>, vector<4x256xf32>
    %26 = vector.extract_strided_slice %0 {offsets = [0, 0], sizes = [8, 1], strides = [1, 1]} : vector<8x4xf32> to vector<8x1xf32>
    %27 = vector.extract_strided_slice %25 {offsets = [0, 0], sizes = [1, 256], strides = [1, 1]} : vector<4x256xf32> to vector<1x256xf32>
    %28 = vector.broadcast %26 : vector<8x1xf32> to vector<8x256xf32>
    %29 = vector.broadcast %27 : vector<1x256xf32> to vector<8x256xf32>
    %30 = arith.mulf %28, %29 : vector<8x256xf32>
    %31 = vector.extract_strided_slice %0 {offsets = [0, 1], sizes = [8, 1], strides = [1, 1]} : vector<8x4xf32> to vector<8x1xf32>
    %32 = vector.extract_strided_slice %25 {offsets = [1, 0], sizes = [1, 256], strides = [1, 1]} : vector<4x256xf32> to vector<1x256xf32>
    %33 = vector.broadcast %31 : vector<8x1xf32> to vector<8x256xf32>
    %34 = vector.broadcast %32 : vector<1x256xf32> to vector<8x256xf32>
    %35 = arith.mulf %33, %34 : vector<8x256xf32>
    %36 = vector.extract_strided_slice %0 {offsets = [0, 2], sizes = [8, 1], strides = [1, 1]} : vector<8x4xf32> to vector<8x1xf32>
    %37 = vector.extract_strided_slice %25 {offsets = [2, 0], sizes = [1, 256], strides = [1, 1]} : vector<4x256xf32> to vector<1x256xf32>
    %38 = vector.broadcast %36 : vector<8x1xf32> to vector<8x256xf32>
    %39 = vector.broadcast %37 : vector<1x256xf32> to vector<8x256xf32>
    %40 = arith.mulf %38, %39 : vector<8x256xf32>
    %41 = vector.extract_strided_slice %0 {offsets = [0, 3], sizes = [8, 1], strides = [1, 1]} : vector<8x4xf32> to vector<8x1xf32>
    %42 = vector.extract_strided_slice %25 {offsets = [3, 0], sizes = [1, 256], strides = [1, 1]} : vector<4x256xf32> to vector<1x256xf32>
    %43 = vector.broadcast %41 : vector<8x1xf32> to vector<8x256xf32>
    %44 = vector.broadcast %42 : vector<1x256xf32> to vector<8x256xf32>
    %45 = arith.mulf %43, %44 : vector<8x256xf32>
    %46 = vector.broadcast %1 : vector<8x1xf32> to vector<8x256xf32>
    %47 = arith.addf %46, %30 : vector<8x256xf32>
    %48 = arith.addf %35, %40 : vector<8x256xf32>
    %49 = arith.addf %47, %48 : vector<8x256xf32>
    %50 = arith.addf %49, %45 : vector<8x256xf32>
    %cst = arith.constant 0.000000e+00 : f32
    %51 = vector.broadcast %cst : f32 to vector<8x256xf32>
    %52 = arith.maximumf %50, %51 : vector<8x256xf32>
    %c17_i32 = arith.constant 17 : i32
    %53 = tpu.dynamic_rotate %52 by %c17_i32 dim 1 : vector<8x256xf32>, i32 -> vector<8x256xf32>
    %54 = vector.broadcast %7 : vector<1x256xf32> to vector<8x256xf32>
    %55 = arith.mulf %53, %54 : vector<8x256xf32>
    %56 = vector.broadcast %8 : vector<8x1xf32> to vector<8x256xf32>
    %57 = arith.mulf %55, %56 : vector<8x256xf32>
    %c16_i32 = arith.constant 16 : i32
    %58 = tpu.dynamic_rotate %52 by %c16_i32 dim 1 : vector<8x256xf32>, i32 -> vector<8x256xf32>
    %59 = vector.broadcast %9 : vector<1x256xf32> to vector<8x256xf32>
    %60 = arith.mulf %58, %59 : vector<8x256xf32>
    %61 = vector.broadcast %10 : vector<8x1xf32> to vector<8x256xf32>
    %62 = arith.mulf %60, %61 : vector<8x256xf32>
    %63 = arith.addf %57, %62 : vector<8x256xf32>
    %c15_i32 = arith.constant 15 : i32
    %64 = tpu.dynamic_rotate %52 by %c15_i32 dim 1 : vector<8x256xf32>, i32 -> vector<8x256xf32>
    %65 = vector.broadcast %11 : vector<1x256xf32> to vector<8x256xf32>
    %66 = arith.mulf %64, %65 : vector<8x256xf32>
    %67 = vector.broadcast %12 : vector<8x1xf32> to vector<8x256xf32>
    %68 = arith.mulf %66, %67 : vector<8x256xf32>
    %69 = arith.addf %63, %68 : vector<8x256xf32>
    %c1_i32 = arith.constant 1 : i32
    %70 = tpu.dynamic_rotate %52 by %c1_i32 dim 1 : vector<8x256xf32>, i32 -> vector<8x256xf32>
    %71 = vector.broadcast %13 : vector<1x256xf32> to vector<8x256xf32>
    %72 = arith.mulf %70, %71 : vector<8x256xf32>
    %73 = vector.broadcast %14 : vector<8x1xf32> to vector<8x256xf32>
    %74 = arith.mulf %72, %73 : vector<8x256xf32>
    %75 = arith.addf %69, %74 : vector<8x256xf32>
    %76 = vector.broadcast %15 : vector<1x256xf32> to vector<8x256xf32>
    %77 = arith.mulf %52, %76 : vector<8x256xf32>
    %78 = vector.broadcast %16 : vector<8x1xf32> to vector<8x256xf32>
    %79 = arith.mulf %77, %78 : vector<8x256xf32>
    %80 = arith.addf %75, %79 : vector<8x256xf32>
    %c255_i32 = arith.constant 255 : i32
    %81 = tpu.dynamic_rotate %52 by %c255_i32 dim 1 : vector<8x256xf32>, i32 -> vector<8x256xf32>
    %82 = vector.broadcast %17 : vector<1x256xf32> to vector<8x256xf32>
    %83 = arith.mulf %81, %82 : vector<8x256xf32>
    %84 = vector.broadcast %18 : vector<8x1xf32> to vector<8x256xf32>
    %85 = arith.mulf %83, %84 : vector<8x256xf32>
    %86 = arith.addf %80, %85 : vector<8x256xf32>
    %c241_i32 = arith.constant 241 : i32
    %87 = tpu.dynamic_rotate %52 by %c241_i32 dim 1 : vector<8x256xf32>, i32 -> vector<8x256xf32>
    %88 = vector.broadcast %19 : vector<1x256xf32> to vector<8x256xf32>
    %89 = arith.mulf %87, %88 : vector<8x256xf32>
    %90 = vector.broadcast %20 : vector<8x1xf32> to vector<8x256xf32>
    %91 = arith.mulf %89, %90 : vector<8x256xf32>
    %92 = arith.addf %86, %91 : vector<8x256xf32>
    %c240_i32 = arith.constant 240 : i32
    %93 = tpu.dynamic_rotate %52 by %c240_i32 dim 1 : vector<8x256xf32>, i32 -> vector<8x256xf32>
    %94 = vector.broadcast %21 : vector<1x256xf32> to vector<8x256xf32>
    %95 = arith.mulf %93, %94 : vector<8x256xf32>
    %96 = vector.broadcast %22 : vector<8x1xf32> to vector<8x256xf32>
    %97 = arith.mulf %95, %96 : vector<8x256xf32>
    %98 = arith.addf %92, %97 : vector<8x256xf32>
    %c239_i32 = arith.constant 239 : i32
    %99 = tpu.dynamic_rotate %52 by %c239_i32 dim 1 : vector<8x256xf32>, i32 -> vector<8x256xf32>
    %100 = vector.broadcast %23 : vector<1x256xf32> to vector<8x256xf32>
    %101 = arith.mulf %99, %100 : vector<8x256xf32>
    %102 = vector.broadcast %24 : vector<8x1xf32> to vector<8x256xf32>
    %103 = arith.mulf %101, %102 : vector<8x256xf32>
    %104 = arith.addf %98, %103 : vector<8x256xf32>
    %105 = vector.broadcast %3 : vector<8x1xf32> to vector<8x256xf32>
    %106 = arith.addf %104, %105 : vector<8x256xf32>
    %cst_15 = arith.constant 0.000000e+00 : f32
    %107 = vector.broadcast %cst_15 : f32 to vector<8x256xf32>
    %108 = arith.maximumf %106, %107 : vector<8x256xf32>
    %109 = vector.extract_strided_slice %4 {offsets = [0, 0], sizes = [4, 1], strides = [1, 1]} : vector<4x8xf32> to vector<4x1xf32>
    %110 = vector.extract_strided_slice %108 {offsets = [0, 0], sizes = [1, 256], strides = [1, 1]} : vector<8x256xf32> to vector<1x256xf32>
    %111 = vector.broadcast %109 : vector<4x1xf32> to vector<4x256xf32>
    %112 = vector.broadcast %110 : vector<1x256xf32> to vector<4x256xf32>
    %113 = arith.mulf %111, %112 : vector<4x256xf32>
    %114 = vector.extract_strided_slice %4 {offsets = [0, 1], sizes = [4, 1], strides = [1, 1]} : vector<4x8xf32> to vector<4x1xf32>
    %115 = vector.extract_strided_slice %108 {offsets = [1, 0], sizes = [1, 256], strides = [1, 1]} : vector<8x256xf32> to vector<1x256xf32>
    %116 = vector.broadcast %114 : vector<4x1xf32> to vector<4x256xf32>
    %117 = vector.broadcast %115 : vector<1x256xf32> to vector<4x256xf32>
    %118 = arith.mulf %116, %117 : vector<4x256xf32>
    %119 = vector.extract_strided_slice %4 {offsets = [0, 2], sizes = [4, 1], strides = [1, 1]} : vector<4x8xf32> to vector<4x1xf32>
    %120 = vector.extract_strided_slice %108 {offsets = [2, 0], sizes = [1, 256], strides = [1, 1]} : vector<8x256xf32> to vector<1x256xf32>
    %121 = vector.broadcast %119 : vector<4x1xf32> to vector<4x256xf32>
    %122 = vector.broadcast %120 : vector<1x256xf32> to vector<4x256xf32>
    %123 = arith.mulf %121, %122 : vector<4x256xf32>
    %124 = vector.extract_strided_slice %4 {offsets = [0, 3], sizes = [4, 1], strides = [1, 1]} : vector<4x8xf32> to vector<4x1xf32>
    %125 = vector.extract_strided_slice %108 {offsets = [3, 0], sizes = [1, 256], strides = [1, 1]} : vector<8x256xf32> to vector<1x256xf32>
    %126 = vector.broadcast %124 : vector<4x1xf32> to vector<4x256xf32>
    %127 = vector.broadcast %125 : vector<1x256xf32> to vector<4x256xf32>
    %128 = arith.mulf %126, %127 : vector<4x256xf32>
    %129 = vector.extract_strided_slice %4 {offsets = [0, 4], sizes = [4, 1], strides = [1, 1]} : vector<4x8xf32> to vector<4x1xf32>
    %130 = vector.extract_strided_slice %108 {offsets = [4, 0], sizes = [1, 256], strides = [1, 1]} : vector<8x256xf32> to vector<1x256xf32>
    %131 = vector.broadcast %129 : vector<4x1xf32> to vector<4x256xf32>
    %132 = vector.broadcast %130 : vector<1x256xf32> to vector<4x256xf32>
    %133 = arith.mulf %131, %132 : vector<4x256xf32>
    %134 = vector.extract_strided_slice %4 {offsets = [0, 5], sizes = [4, 1], strides = [1, 1]} : vector<4x8xf32> to vector<4x1xf32>
    %135 = vector.extract_strided_slice %108 {offsets = [5, 0], sizes = [1, 256], strides = [1, 1]} : vector<8x256xf32> to vector<1x256xf32>
    %136 = vector.broadcast %134 : vector<4x1xf32> to vector<4x256xf32>
    %137 = vector.broadcast %135 : vector<1x256xf32> to vector<4x256xf32>
    %138 = arith.mulf %136, %137 : vector<4x256xf32>
    %139 = vector.extract_strided_slice %4 {offsets = [0, 6], sizes = [4, 1], strides = [1, 1]} : vector<4x8xf32> to vector<4x1xf32>
    %140 = vector.extract_strided_slice %108 {offsets = [6, 0], sizes = [1, 256], strides = [1, 1]} : vector<8x256xf32> to vector<1x256xf32>
    %141 = vector.broadcast %139 : vector<4x1xf32> to vector<4x256xf32>
    %142 = vector.broadcast %140 : vector<1x256xf32> to vector<4x256xf32>
    %143 = arith.mulf %141, %142 : vector<4x256xf32>
    %144 = vector.extract_strided_slice %4 {offsets = [0, 7], sizes = [4, 1], strides = [1, 1]} : vector<4x8xf32> to vector<4x1xf32>
    %145 = vector.extract_strided_slice %108 {offsets = [7, 0], sizes = [1, 256], strides = [1, 1]} : vector<8x256xf32> to vector<1x256xf32>
    %146 = vector.broadcast %144 : vector<4x1xf32> to vector<4x256xf32>
    %147 = vector.broadcast %145 : vector<1x256xf32> to vector<4x256xf32>
    %148 = arith.mulf %146, %147 : vector<4x256xf32>
    %149 = vector.broadcast %5 : vector<4x1xf32> to vector<4x256xf32>
    %150 = arith.addf %149, %113 : vector<4x256xf32>
    %151 = arith.addf %118, %123 : vector<4x256xf32>
    %152 = arith.addf %128, %133 : vector<4x256xf32>
    %153 = arith.addf %138, %143 : vector<4x256xf32>
    %154 = arith.addf %150, %151 : vector<4x256xf32>
    %155 = arith.addf %152, %153 : vector<4x256xf32>
    %156 = arith.addf %154, %155 : vector<4x256xf32>
    %157 = arith.addf %156, %148 : vector<4x256xf32>
    %158 = arith.addf %157, %25 : vector<4x256xf32>
    %c0_16 = arith.constant 0 : index
    %c0_17 = arith.constant 0 : index
    %159 = vector.load %arg9[%c0_16, %c0_17] : memref<4x256xf32, #tpu.memory_space<vmem>>, vector<4x256xf32>
    tpu.vector_store %arg9[%c0_16, %c0_17], %158 {strides = array<i32>} : memref<4x256xf32, #tpu.memory_space<vmem>>, vector<4x256xf32>,
    return
  }
  func.func @transform_0(%arg0: i32) -> (i32, i32) {
    %c0_i32 = arith.constant 0 : i32
    %c0_i32_0 = arith.constant 0 : i32
    return %c0_i32, %arg0 : i32, i32
  }
  func.func @transform_1(%arg0: i32) -> (i32, i32) {
    %c0_i32 = arith.constant 0 : i32
    %c0_i32_0 = arith.constant 0 : i32
    %c0_i32_1 = arith.constant 0 : i32
    return %c0_i32, %c0_i32_0 : i32, i32
  }
  func.func @transform_2(%arg0: i32) -> (i32, i32) {
    %c0_i32 = arith.constant 0 : i32
    %c0_i32_0 = arith.constant 0 : i32
    %c0_i32_1 = arith.constant 0 : i32
    return %c0_i32, %c0_i32_0 : i32, i32
  }
  func.func @transform_3(%arg0: i32) -> (i32, i32) {
    %c0_i32 = arith.constant 0 : i32
    %c0_i32_0 = arith.constant 0 : i32
    %c0_i32_1 = arith.constant 0 : i32
    return %c0_i32, %c0_i32_0 : i32, i32
  }
  func.func @transform_4(%arg0: i32) -> (i32, i32) {
    %c0_i32 = arith.constant 0 : i32
    %c0_i32_0 = arith.constant 0 : i32
    %c0_i32_1 = arith.constant 0 : i32
    return %c0_i32, %c0_i32_0 : i32, i32
  }
  func.func @transform_5(%arg0: i32) -> (i32, i32) {
    %c0_i32 = arith.constant 0 : i32
    %c0_i32_0 = arith.constant 0 : i32
    %c0_i32_1 = arith.constant 0 : i32
    return %c0_i32, %c0_i32_0 : i32, i32
  }
  func.func @transform_6(%arg0: i32) -> (i32, i32) {
    %c0_i32 = arith.constant 0 : i32
    %c0_i32_0 = arith.constant 0 : i32
    %c0_i32_1 = arith.constant 0 : i32
    return %c0_i32, %c0_i32_0 : i32, i32
  }
  func.func @transform_7(%arg0: i32) -> (i32, i32) {
    %c0_i32 = arith.constant 0 : i32
    %c0_i32_0 = arith.constant 0 : i32
    %c0_i32_1 = arith.constant 0 : i32
    return %c0_i32, %c0_i32_0 : i32, i32
  }
  func.func @transform_8(%arg0: i32) -> (i32, i32) {
    %c0_i32 = arith.constant 0 : i32
    %c0_i32_0 = arith.constant 0 : i32
    return %c0_i32, %arg0 : i32, i32
  }
}

</mosaic_0001>

<llo_original>
// kernel: tpu_custom_call.1
$region0: #{tpu_custom_call.1}
  #allocation0 [shape = 'u32[]', space=smem, size = 0x4, offset = 0x4, fixed_abs, tag = 'smem constant byte address 0x4 - core index']
  #allocation1 [shape = 'u32[144,128]{1,0:T(1,128)}', space=vmem, size = 0x12000, scoped, tag = 'internal scratch']
  %s0 = inlined_call_operand.hbm [shape: f32[4,512], index: 0, kind: input, shape index: {}]
  %s1 = inlined_call_operand.vmem [shape: f32[9,256], index: 1, kind: input, shape index: {}]
  %s2 = inlined_call_operand.vmem [shape: f32[8,4], index: 2, kind: input, shape index: {}]
  %s3 = inlined_call_operand.vmem [shape: f32[8,1], index: 3, kind: input, shape index: {}]
  %s4 = inlined_call_operand.vmem [shape: f32[8,9], index: 4, kind: input, shape index: {}]
  %s5 = inlined_call_operand.vmem [shape: f32[8,1], index: 5, kind: input, shape index: {}]
  %s6 = inlined_call_operand.vmem [shape: f32[4,8], index: 6, kind: input, shape index: {}]
  %s7 = inlined_call_operand.vmem [shape: f32[4,1], index: 7, kind: input, shape index: {}]
  %s8 = inlined_call_operand.hbm [shape: f32[4,512], index: 8, kind: output, shape index: {}]
  %s9 = sld [smem:[#allocation0]]
  $region69: #{tpu_custom_call.1} parent=0
    _
  %s11 = ssub.s32 1, %s9
  %s12 = scalar_select 0, %s11, %s9
  $region1: #{tpu_custom_call.1} parent=0
    #allocation2 [shape = 'u8[8192]{0}', space=vmem, size = 0x2000, scoped, tag = 'input window, operand 0']
    #allocation3 [shape = 's32[2]{0}', space=sflag, size = 0x8, scoped, tag = 'scoped memory for tpu_custom_call.1']
    #allocation4 [shape = 's32[2]{0}', space=sflag, size = 0x8, scoped, tag = 'scoped memory for tpu_custom_call.1']
    #allocation5 [shape = 'u8[8192]{0}', space=vmem, size = 0x2000, scoped, tag = 'output window, operand 0']
    %13 = vsyncpa [#allocation3], 0
    %s14 = scalar_lea.sflag [#allocation3], 1
    %15 = vsyncpa %s14, 0
    %16 = vsyncpa [#allocation4], 0
    %s17 = scalar_lea.sflag [#allocation4], 1
    %18 = vsyncpa %s17, 0
    loop: start=0, step=1, limit=4
    $region2: #{tpu_custom_call.1} parent=1 // loop_pre_header
      _
    $region3: #{tpu_custom_call.1} parent=1 // loop_header
      %s20 = sphi 0, %s24
      %p21 = scmp.ge.s32.totalorder %s20, 4
      %s30 = sphi 0, %s32
      %s33 = sphi 0, %s30
      %s34 = sphi 0, %s33
      %s50 = sphi 0, %s34
      %s54 = sphi 0, %s54
      %s56 = sphi 0, %s54
      %s57 = sphi 0, %s56
      %s71 = sphi 0, %s57
      %s75 = sphi 0, %s75
      %s77 = sphi 0, %s75
      %s78 = sphi 0, %s77
      %s92 = sphi 0, %s78
      %s96 = sphi 0, %s96
      %s98 = sphi 0, %s96
      %s99 = sphi 0, %s98
      %s113 = sphi 0, %s99
      %s117 = sphi 0, %s117
      %s119 = sphi 0, %s117
      %s120 = sphi 0, %s119
      %s134 = sphi 0, %s120
      %s138 = sphi 0, %s138
      %s140 = sphi 0, %s138
      %s141 = sphi 0, %s140
      %s155 = sphi 0, %s141
      %s159 = sphi 0, %s159
      %s161 = sphi 0, %s159
      %s162 = sphi 0, %s161
      %s176 = sphi 0, %s162
      %s180 = sphi 0, %s180
      %s182 = sphi 0, %s180
      %s183 = sphi 0, %s182
      %s197 = sphi 0, %s183
      %s203 = sphi 0, %s205
      %s206 = sphi 0, %s203
      %s207 = sphi 0, %s206
      %s223 = sphi 0, %s207
    $region4: #{tpu_custom_call.1} parent=1 // loop_header_branch
      %23 = sbr.rel (%p21) target = $region8
    $region5: #{tpu_custom_call.1} parent=1 // loop_body
      %s25 = ssub.s32 %s20, 1
      %s26 = ssub.s32 %s20, 2
      %s27 = sadd.s32 %s20, 1
      %s28 = ssub.s32 %s20, %s27
      %p29 = scmp.eq.s32.totalorder %s28, 0
      %s31 = sadd.s32 %s30, 1
      %s32 = scalar_select %p29, %s30, %s31
      %p35 = pneg %p29
      %p36 = scmp.eq.s32.totalorder %s20, 1
      %p37 = por %p35, %p36
      %p38 = scmp.ne.s32.totalorder %s30, %s33
      %p39 = scmp.eq.s32.totalorder %s20, 0
      %p40 = por %p38, %p39
      %p41 = scmp.ne.s32.totalorder %s30, %s33
      %p42 = scmp.eq.s32.totalorder %s25, 1
      %p43 = por %p41, %p42
      %p44 = scmp.ne.s32.totalorder %s33, %s34
      %p45 = scmp.eq.s32.totalorder %s25, 0
      %p46 = por %p44, %p45
      %p47 = scmp.ne.s32.totalorder %s33, %s34
      %p48 = scmp.eq.s32.totalorder %s26, 1
      %p49 = por %p47, %p48
      %p51 = scmp.ne.s32.totalorder %s34, %s50
      %p52 = scmp.eq.s32.totalorder %s26, 0
      %p53 = por %p51, %p52
      %s55 = sadd.s32 %s54, 1
      %p58 = scmp.eq.s32.totalorder %s20, 1
      %p59 = scmp.ne.s32.totalorder %s54, %s56
      %p60 = scmp.eq.s32.totalorder %s20, 0
      %p61 = por %p59, %p60
      %p62 = scmp.ne.s32.totalorder %s54, %s56
      %p63 = scmp.eq.s32.totalorder %s25, 1
      %p64 = por %p62, %p63
      %p65 = scmp.ne.s32.totalorder %s56, %s57
      %p66 = scmp.eq.s32.totalorder %s25, 0
      %p67 = por %p65, %p66
      %p68 = scmp.ne.s32.totalorder %s56, %s57
      %p69 = scmp.eq.s32.totalorder %s26, 1
      %p70 = por %p68, %p69
      %p72 = scmp.ne.s32.totalorder %s57, %s71
      %p73 = scmp.eq.s32.totalorder %s26, 0
      %p74 = por %p72, %p73
      %s76 = sadd.s32 %s75, 1
      %p79 = scmp.eq.s32.totalorder %s20, 1
      %p80 = scmp.ne.s32.totalorder %s75, %s77
      %p81 = scmp.eq.s32.totalorder %s20, 0
      %p82 = por %p80, %p81
      %p83 = scmp.ne.s32.totalorder %s75, %s77
      %p84 = scmp.eq.s32.totalorder %s25, 1
      %p85 = por %p83, %p84
      %p86 = scmp.ne.s32.totalorder %s77, %s78
      %p87 = scmp.eq.s32.totalorder %s25, 0
      %p88 = por %p86, %p87
      %p89 = scmp.ne.s32.totalorder %s77, %s78
      %p90 = scmp.eq.s32.totalorder %s26, 1
      %p91 = por %p89, %p90
      %p93 = scmp.ne.s32.totalorder %s78, %s92
      %p94 = scmp.eq.s32.totalorder %s26, 0
      %p95 = por %p93, %p94
      %s97 = sadd.s32 %s96, 1
      %p100 = scmp.eq.s32.totalorder %s20, 1
      %p101 = scmp.ne.s32.totalorder %s96, %s98
      %p102 = scmp.eq.s32.totalorder %s20, 0
      %p103 = por %p101, %p102
      %p104 = scmp.ne.s32.totalorder %s96, %s98
      %p105 = scmp.eq.s32.totalorder %s25, 1
      %p106 = por %p104, %p105
      %p107 = scmp.ne.s32.totalorder %s98, %s99
      %p108 = scmp.eq.s32.totalorder %s25, 0
      %p109 = por %p107, %p108
      %p110 = scmp.ne.s32.totalorder %s98, %s99
      %p111 = scmp.eq.s32.totalorder %s26, 1
      %p112 = por %p110, %p111
      %p114 = scmp.ne.s32.totalorder %s99, %s113
      %p115 = scmp.eq.s32.totalorder %s26, 0
      %p116 = por %p114, %p115
      %s118 = sadd.s32 %s117, 1
      %p121 = scmp.eq.s32.totalorder %s20, 1
      %p122 = scmp.ne.s32.totalorder %s117, %s119
      %p123 = scmp.eq.s32.totalorder %s20, 0
      %p124 = por %p122, %p123
      %p125 = scmp.ne.s32.totalorder %s117, %s119
      %p126 = scmp.eq.s32.totalorder %s25, 1
      %p127 = por %p125, %p126
      %p128 = scmp.ne.s32.totalorder %s119, %s120
      %p129 = scmp.eq.s32.totalorder %s25, 0
      %p130 = por %p128, %p129
      %p131 = scmp.ne.s32.totalorder %s119, %s120
      %p132 = scmp.eq.s32.totalorder %s26, 1
      %p133 = por %p131, %p132
      %p135 = scmp.ne.s32.totalorder %s120, %s134
      %p136 = scmp.eq.s32.totalorder %s26, 0
      %p137 = por %p135, %p136
      %s139 = sadd.s32 %s138, 1
      %p142 = scmp.eq.s32.totalorder %s20, 1
      %p143 = scmp.ne.s32.totalorder %s138, %s140
      %p144 = scmp.eq.s32.totalorder %s20, 0
      %p145 = por %p143, %p144
      %p146 = scmp.ne.s32.totalorder %s138, %s140
      %p147 = scmp.eq.s32.totalorder %s25, 1
      %p148 = por %p146, %p147
      %p149 = scmp.ne.s32.totalorder %s140, %s141
      %p150 = scmp.eq.s32.totalorder %s25, 0
      %p151 = por %p149, %p150
      %p152 = scmp.ne.s32.totalorder %s140, %s141
      %p153 = scmp.eq.s32.totalorder %s26, 1
      %p154 = por %p152, %p153
      %p156 = scmp.ne.s32.totalorder %s141, %s155
      %p157 = scmp.eq.s32.totalorder %s26, 0
      %p158 = por %p156, %p157
      %s160 = sadd.s32 %s159, 1
      %p163 = scmp.eq.s32.totalorder %s20, 1
      %p164 = scmp.ne.s32.totalorder %s159, %s161
      %p165 = scmp.eq.s32.totalorder %s20, 0
      %p166 = por %p164, %p165
      %p167 = scmp.ne.s32.totalorder %s159, %s161
      %p168 = scmp.eq.s32.totalorder %s25, 1
      %p169 = por %p167, %p168
      %p170 = scmp.ne.s32.totalorder %s161, %s162
      %p171 = scmp.eq.s32.totalorder %s25, 0
      %p172 = por %p170, %p171
      %p173 = scmp.ne.s32.totalorder %s161, %s162
      %p174 = scmp.eq.s32.totalorder %s26, 1
      %p175 = por %p173, %p174
      %p177 = scmp.ne.s32.totalorder %s162, %s176
      %p178 = scmp.eq.s32.totalorder %s26, 0
      %p179 = por %p177, %p178
      %s181 = sadd.s32 %s180, 1
      %p184 = scmp.eq.s32.totalorder %s20, 1
      %p185 = scmp.ne.s32.totalorder %s180, %s182
      %p186 = scmp.eq.s32.totalorder %s20, 0
      %p187 = por %p185, %p186
      %p188 = scmp.ne.s32.totalorder %s180, %s182
      %p189 = scmp.eq.s32.totalorder %s25, 1
      %p190 = por %p188, %p189
      %p191 = scmp.ne.s32.totalorder %s182, %s183
      %p192 = scmp.eq.s32.totalorder %s25, 0
      %p193 = por %p191, %p192
      %p194 = scmp.ne.s32.totalorder %s182, %s183
      %p195 = scmp.eq.s32.totalorder %s26, 1
      %p196 = por %p194, %p195
      %p198 = scmp.ne.s32.totalorder %s183, %s197
      %p199 = scmp.eq.s32.totalorder %s26, 0
      %p200 = por %p198, %p199
      %s201 = ssub.s32 %s20, %s27
      %p202 = scmp.eq.s32.totalorder %s201, 0
      %s204 = sadd.s32 %s203, 1
      %s205 = scalar_select %p202, %s203, %s204
      %p208 = pneg %p202
      %p209 = scmp.eq.s32.totalorder %s20, 1
      %p210 = por %p208, %p209
      %p211 = scmp.ne.s32.totalorder %s203, %s206
      %p212 = scmp.eq.s32.totalorder %s20, 0
      %p213 = por %p211, %p212
      %p214 = scmp.ne.s32.totalorder %s203, %s206
      %p215 = scmp.eq.s32.totalorder %s25, 1
      %p216 = por %p214, %p215
      %p217 = scmp.ne.s32.totalorder %s206, %s207
      %p218 = scmp.eq.s32.totalorder %s25, 0
      %p219 = por %p217, %p218
      %p220 = scmp.ne.s32.totalorder %s206, %s207
      %p221 = scmp.eq.s32.totalorder %s26, 1
      %p222 = por %p220, %p221
      %p224 = scmp.ne.s32.totalorder %s207, %s223
      %p225 = scmp.eq.s32.totalorder %s26, 0
      %p226 = por %p224, %p225
      %p227 = scmp.le.s32.totalorder 1, %s20
      %p228 = scmp.lt.s32.totalorder %s20, 3
      %p229 = pnand %p227, %p228
      %p230 = pneg %p229
      // Predicated region
      $region9: #{tpu_custom_call.1} parent=5 // pred_check
        _
      $region10: #{tpu_custom_call.1} parent=5 // pred_check_branch
        %232 = sbr.rel (%p229) target = $region12
      $region11: #{tpu_custom_call.1} parent=5 // pred_region
        %s233 = ssub.s32 %s20, 1
        // Predicated region
        $region13: #{tpu_custom_call.1} parent=11 // pred_check
          %p234 = pneg %p67
        $region14: #{tpu_custom_call.1} parent=11 // pred_check_branch
          %236 = sbr.rel (%p234) target = $region16
        $region15: #{tpu_custom_call.1} parent=11 // pred_region
          _
        $region16: #{tpu_custom_call.1} parent=11 // pred_fallthru
          _
        // Predicated region
        $region17: #{tpu_custom_call.1} parent=11 // pred_check
          %p237 = pneg %p88
        $region18: #{tpu_custom_call.1} parent=11 // pred_check_branch
          %239 = sbr.rel (%p237) target = $region20
        $region19: #{tpu_custom_call.1} parent=11 // pred_region
          _
        $region20: #{tpu_custom_call.1} parent=11 // pred_fallthru
          _
        // Predicated region
        $region21: #{tpu_custom_call.1} parent=11 // pred_check
          %p240 = pneg %p109
        $region22: #{tpu_custom_call.1} parent=11 // pred_check_branch
          %242 = sbr.rel (%p240) target = $region24
        $region23: #{tpu_custom_call.1} parent=11 // pred_region
          _
        $region24: #{tpu_custom_call.1} parent=11 // pred_fallthru
          _
        // Predicated region
        $region25: #{tpu_custom_call.1} parent=11 // pred_check
          %p243 = pneg %p130
        $region26: #{tpu_custom_call.1} parent=11 // pred_check_branch
          %245 = sbr.rel (%p243) target = $region28
        $region27: #{tpu_custom_call.1} parent=11 // pred_region
          _
        $region28: #{tpu_custom_call.1} parent=11 // pred_fallthru
          _
        // Predicated region
        $region29: #{tpu_custom_call.1} parent=11 // pred_check
          %p246 = pneg %p151
        $region30: #{tpu_custom_call.1} parent=11 // pred_check_branch
          %248 = sbr.rel (%p246) target = $region32
        $region31: #{tpu_custom_call.1} parent=11 // pred_region
          _
        $region32: #{tpu_custom_call.1} parent=11 // pred_fallthru
          _
        // Predicated region
        $region33: #{tpu_custom_call.1} parent=11 // pred_check
          %p249 = pneg %p172
        $region34: #{tpu_custom_call.1} parent=11 // pred_check_branch
          %251 = sbr.rel (%p249) target = $region36
        $region35: #{tpu_custom_call.1} parent=11 // pred_region
          _
        $region36: #{tpu_custom_call.1} parent=11 // pred_fallthru
          _
        // Predicated region
        $region37: #{tpu_custom_call.1} parent=11 // pred_check
          %p252 = pneg %p193
        $region38: #{tpu_custom_call.1} parent=11 // pred_check_branch
          %254 = sbr.rel (%p252) target = $region40
        $region39: #{tpu_custom_call.1} parent=11 // pred_region
          _
        $region40: #{tpu_custom_call.1} parent=11 // pred_fallthru
          _
      $region12: #{tpu_custom_call.1} parent=5 // pred_fallthru
        _
      %p255 = scmp.lt.s32.totalorder %s20, 2
      // Predicated region
      $region41: #{tpu_custom_call.1} parent=5 // pred_check
        %p256 = pneg %p255
      $region42: #{tpu_custom_call.1} parent=5 // pred_check_branch
        %258 = sbr.rel (%p256) target = $region44
      $region43: #{tpu_custom_call.1} parent=5 // pred_region
        // Predicated region
        $region45: #{tpu_custom_call.1} parent=43 // pred_check
          %p259 = pneg %p40
        $region46: #{tpu_custom_call.1} parent=43 // pred_check_branch
          %261 = sbr.rel (%p259) target = $region48
        $region47: #{tpu_custom_call.1} parent=43 // pred_region
          %s262 = sand.u32 %s30, 1
          %s263 = scalar_lea.sflag [#allocation3], %s262
          %s264 = sand.u32 %s30, 1
          %s265 = smul.addr %s264, 8
          %s266 = scalar_lea.vmem [#allocation2], %s265
          %s267 = smul.u32 2, %s20
          %s269 = ssub.s32 128, 128
          %270 = vsyncadd %s263, %s269
          %s271 = smul.addr %s267, 64
          %s272 = scalar_lea.hbm %s0, %s271
          %s274 = sshll.u32 %s266, 4
          %s275 = int_to_ptr.vmem [resolvable:$true] %s274
          %277 = dma.hbm_to_vmem [thread:$0]  %s272, 128, %s275, %s263
        $region48: #{tpu_custom_call.1} parent=43 // pred_fallthru
          _
      $region44: #{tpu_custom_call.1} parent=5 // pred_fallthru
        _
      %p278 = scmp.le.s32.totalorder 1, %s20
      %p279 = scmp.lt.s32.totalorder %s20, 3
      %p280 = pnand %p278, %p279
      %p281 = pneg %p280
      // Predicated region
      $region49: #{tpu_custom_call.1} parent=5 // pred_check
        _
      $region50: #{tpu_custom_call.1} parent=5 // pred_check_branch
        %283 = sbr.rel (%p280) target = $region52
      $region51: #{tpu_custom_call.1} parent=5 // pred_region
        %s284 = ssub.s32 %s20, 1
        %s285 = sand.u32 %s33, 1
        %s286 = scalar_lea.sflag [#allocation3], %s285
        %s287 = sand.u32 %s33, 1
        %s288 = smul.addr %s287, 8
        %s289 = scalar_lea.vmem [#allocation2], %s288
        // Predicated region
        $region53: #{tpu_custom_call.1} parent=51 // pred_check
          %p290 = pneg %p46
        $region54: #{tpu_custom_call.1} parent=51 // pred_check_branch
          %292 = sbr.rel (%p290) target = $region56
        $region55: #{tpu_custom_call.1} parent=51 // pred_region
          %293 = dma.done %s286, 128
        $region56: #{tpu_custom_call.1} parent=51 // pred_fallthru
          _
        %s294 = sand.u32 %s33, 1
        %s295 = scalar_lea.sflag [#allocation3], %s294
        %s296 = sand.u32 %s33, 1
        %s297 = smul.addr %s296, 8
        %s298 = scalar_lea.vmem [#allocation2], %s297
        %p299 = pneg %p46
        %p300 = pneg %p43
        %p301 = pneg %p67
        %p302 = pneg %p64
        %p303 = pneg %p88
        %p304 = pneg %p85
        %p305 = pneg %p109
        %p306 = pneg %p106
        %p307 = pneg %p130
        %p308 = pneg %p127
        %p309 = pneg %p151
        %p310 = pneg %p148
        %p311 = pneg %p172
        %p312 = pneg %p169
        %p313 = pneg %p193
        %p314 = pneg %p190
        %p315 = pneg %p219
        %p316 = pneg %p216
        %s317 = sand.u32 %s206, 1
        %s318 = scalar_lea.sflag [#allocation4], %s317
        %s319 = sand.u32 %s206, 1
        %s320 = smul.addr %s319, 8
        %s321 = scalar_lea.vmem [#allocation5], %s320
        %s322 = smul.u32 2, %s25
        %s323 = smul.u32 2, %s25
        %v324 = vld [vmem:[%s2] sm:$0xff]
        %v325 = vld [vmem:[%s3] sm:$0xff]
        %v326 = vld [vmem:[%s4] sm:$0xff]
        %v327 = vld [vmem:[%s5] sm:$0xff]
        %v328 = vld [vmem:[%s6] sm:$0xf]
        %v329 = vld [vmem:[%s7] sm:$0xf]
        %v330 = vld [vmem:[%s1] sm:$0xff]
        %v331 = vld [vmem:[%s1 + $0x8] sm:$0xff]
        %v332 = vld [vmem:[%s1 + $0x10] sm:$0x1]
        %v333 = vld [vmem:[%s1 + $0x18] sm:$0x1]
        %v334 = vld [vmem:[%s289] sm:$0xff]
        %336 = vset.pattern.permute.xlu0 0
        %337 = vperm.xlu0 %336, %v324
        %v338 = vpop.permute.xlu0 %337
        %v341 = vlaneseq
        %v342 = vshrl.u32 %v341, 7
        %v343 = vsub.s32 0, %v342
        %v344 = vrot.slane %v334, %v343
        %v345 = vlaneseq
        %v346 = vshrl.u32 %v345, 7
        %v347 = vsub.s32 4, %v346
        %v348 = vrot.slane %v334, %v347
        %v351 = vlaneseq
        %v352 = vshrl.u32 %v351, 7
        %v353 = vsub.s32 0, %v352
        %v354 = vrot.slane %v344, %v353
        %v355 = vlaneseq
        %v356 = vshrl.u32 %v355, 7
        %v357 = vsub.s32 0, %v356
        %v358 = vrot.slane %v348, %v357
        %v359 = vmul.f32 %v338, %v354
        %v360 = vmul.f32 %v338, %v358
        %361 = vset.pattern.permute.xlu0 1
        %362 = vperm.xlu0 %361, %v324
        %v363 = vpop.permute.xlu0 %362
        %v365 = vlaneseq
        %v366 = vshrl.u32 %v365, 7
        %v367 = vsub.s32 1, %v366
        %v368 = vrot.slane %v334, %v367
        %v369 = vlaneseq
        %v370 = vshrl.u32 %v369, 7
        %v371 = vsub.s32 5, %v370
        %v372 = vrot.slane %v334, %v371
        %v375 = vlaneseq
        %v376 = vshrl.u32 %v375, 7
        %v377 = vsub.s32 1, %v376
        %v378 = vrot.slane %v368, %v377
        %v379 = vlaneseq
        %v380 = vshrl.u32 %v379, 7
        %v381 = vsub.s32 1, %v380
        %v382 = vrot.slane %v372, %v381
        %v383 = vmul.f32 %v363, %v378
        %v384 = vmul.f32 %v363, %v382
        %385 = vset.pattern.permute.xlu0 2
        %386 = vperm.xlu0 %385, %v324
        %v387 = vpop.permute.xlu0 %386
        %v389 = vlaneseq
        %v390 = vshrl.u32 %v389, 7
        %v391 = vsub.s32 2, %v390
        %v392 = vrot.slane %v334, %v391
        %v393 = vlaneseq
        %v394 = vshrl.u32 %v393, 7
        %v395 = vsub.s32 6, %v394
        %v396 = vrot.slane %v334, %v395
        %v399 = vlaneseq
        %v400 = vshrl.u32 %v399, 7
        %v401 = vsub.s32 2, %v400
        %v402 = vrot.slane %v392, %v401
        %v403 = vlaneseq
        %v404 = vshrl.u32 %v403, 7
        %v405 = vsub.s32 2, %v404
        %v406 = vrot.slane %v396, %v405
        %v407 = vmul.f32 %v387, %v402
        %v408 = vmul.f32 %v387, %v406
        %409 = vset.pattern.permute.xlu0 3
        %410 = vperm.xlu0 %409, %v324
        %v411 = vpop.permute.xlu0 %410
        %v413 = vlaneseq
        %v414 = vshrl.u32 %v413, 7
        %v415 = vsub.s32 3, %v414
        %v416 = vrot.slane %v334, %v415
        %v417 = vlaneseq
        %v418 = vshrl.u32 %v417, 7
        %v419 = vsub.s32 7, %v418
        %v420 = vrot.slane %v334, %v419
        %v423 = vlaneseq
        %v424 = vshrl.u32 %v423, 7
        %v425 = vsub.s32 3, %v424
        %v426 = vrot.slane %v416, %v425
        %v427 = vlaneseq
        %v428 = vshrl.u32 %v427, 7
        %v429 = vsub.s32 3, %v428
        %v430 = vrot.slane %v420, %v429
        %v431 = vmul.f32 %v411, %v426
        %v432 = vmul.f32 %v411, %v430
        %434 = vset.pattern.permute.xlu0 0
        %435 = vperm.xlu0 %434, %v325
        %v436 = vpop.permute.xlu0 %435
        %v438 = vadd.f32 %v436, %v359
        %v439 = vadd.f32 %v436, %v360
        %v440 = vadd.f32 %v383, %v407
        %v441 = vadd.f32 %v384, %v408
        %v442 = vadd.f32 %v438, %v440
        %v443 = vadd.f32 %v439, %v441
        %v444 = vadd.f32 %v442, %v431
        %v445 = vadd.f32 %v443, %v432
        %v446 = vmax.f32 %v444, 0.0
        %v447 = vmax.f32 %v445, 0.0
        %448 = vrot.lane.b32.xlu0 %v446, 17
        %v449 = vpop.permute.xlu0 %448
        %450 = vrot.lane.b32.xlu0 %v447, 17
        %v451 = vpop.permute.xlu0 %450
        %v452 = vlaneseq
        %v453 = vand.u32 %v452, 127
        %vm454 = vcmp.lt.s32.totalorder %v453, 17
        %v455 = vsel %vm454, %v449, %v451
        %v456 = vsel %vm454, %v451, %v449
        %v457 = vlaneseq
        %v458 = vshrl.u32 %v457, 7
        %v459 = vsub.s32 0, %v458
        %v460 = vrot.slane %v330, %v459
        %v461 = vlaneseq
        %v462 = vshrl.u32 %v461, 7
        %v463 = vsub.s32 0, %v462
        %v464 = vrot.slane %v331, %v463
        %v465 = vmul.f32 %v456, %v460
        %v466 = vmul.f32 %v455, %v464
        %468 = vset.pattern.permute.xlu0 0
        %469 = vperm.xlu0 %468, %v326
        %v470 = vpop.permute.xlu0 %469
        %v472 = vmul.f32 %v465, %v470
        %v473 = vmul.f32 %v466, %v470
        %474 = vrot.lane.b32.xlu0 %v446, 16
        %v475 = vpop.permute.xlu0 %474
        %476 = vrot.lane.b32.xlu0 %v447, 16
        %v477 = vpop.permute.xlu0 %476
        %vm478 = vcmp.lt.s32.totalorder %v453, 16
        %v479 = vsel %vm478, %v475, %v477
        %v480 = vsel %vm478, %v477, %v475
        %v481 = vlaneseq
        %v482 = vshrl.u32 %v481, 7
        %v483 = vsub.s32 1, %v482
        %v484 = vrot.slane %v330, %v483
        %v485 = vlaneseq
        %v486 = vshrl.u32 %v485, 7
        %v487 = vsub.s32 1, %v486
        %v488 = vrot.slane %v331, %v487
        %v489 = vmul.f32 %v480, %v484
        %v490 = vmul.f32 %v479, %v488
        %491 = vset.pattern.permute.xlu0 1
        %492 = vperm.xlu0 %491, %v326
        %v493 = vpop.permute.xlu0 %492
        %v495 = vmul.f32 %v489, %v493
        %v496 = vmul.f32 %v490, %v493
        %v497 = vadd.f32 %v472, %v495
        %v498 = vadd.f32 %v473, %v496
        %499 = vrot.lane.b32.xlu0 %v446, 15
        %v500 = vpop.permute.xlu0 %499
        %501 = vrot.lane.b32.xlu0 %v447, 15
        %v502 = vpop.permute.xlu0 %501
        %vm503 = vcmp.lt.s32.totalorder %v453, 15
        %v504 = vsel %vm503, %v500, %v502
        %v505 = vsel %vm503, %v502, %v500
        %v506 = vlaneseq
        %v507 = vshrl.u32 %v506, 7
        %v508 = vsub.s32 2, %v507
        %v509 = vrot.slane %v330, %v508
        %v510 = vlaneseq
        %v511 = vshrl.u32 %v510, 7
        %v512 = vsub.s32 2, %v511
        %v513 = vrot.slane %v331, %v512
        %v514 = vmul.f32 %v505, %v509
        %v515 = vmul.f32 %v504, %v513
        %516 = vset.pattern.permute.xlu0 2
        %517 = vperm.xlu0 %516, %v326
        %v518 = vpop.permute.xlu0 %517
        %v520 = vmul.f32 %v514, %v518
        %v521 = vmul.f32 %v515, %v518
        %v522 = vadd.f32 %v497, %v520
        %v523 = vadd.f32 %v498, %v521
        %524 = vrot.lane.b32.xlu0 %v446, 1
        %v525 = vpop.permute.xlu0 %524
        %526 = vrot.lane.b32.xlu0 %v447, 1
        %v527 = vpop.permute.xlu0 %526
        %vm528 = vcmp.lt.s32.totalorder %v453, 1
        %v529 = vsel %vm528, %v525, %v527
        %v530 = vsel %vm528, %v527, %v525
        %v531 = vlaneseq
        %v532 = vshrl.u32 %v531, 7
        %v533 = vsub.s32 3, %v532
        %v534 = vrot.slane %v330, %v533
        %v535 = vlaneseq
        %v536 = vshrl.u32 %v535, 7
        %v537 = vsub.s32 3, %v536
        %v538 = vrot.slane %v331, %v537
        %v539 = vmul.f32 %v530, %v534
        %v540 = vmul.f32 %v529, %v538
        %541 = vset.pattern.permute.xlu0 3
        %542 = vperm.xlu0 %541, %v326
        %v543 = vpop.permute.xlu0 %542
        %v545 = vmul.f32 %v539, %v543
        %v546 = vmul.f32 %v540, %v543
        %v547 = vadd.f32 %v522, %v545
        %v548 = vadd.f32 %v523, %v546
        %v549 = vlaneseq
        %v550 = vshrl.u32 %v549, 7
        %v551 = vsub.s32 4, %v550
        %v552 = vrot.slane %v330, %v551
        %v553 = vlaneseq
        %v554 = vshrl.u32 %v553, 7
        %v555 = vsub.s32 4, %v554
        %v556 = vrot.slane %v331, %v555
        %v557 = vmul.f32 %v446, %v552
        %v558 = vmul.f32 %v447, %v556
        %559 = vset.pattern.permute.xlu0 4
        %560 = vperm.xlu0 %559, %v326
        %v561 = vpop.permute.xlu0 %560
        %v563 = vmul.f32 %v557, %v561
        %v564 = vmul.f32 %v558, %v561
        %v565 = vadd.f32 %v547, %v563
        %v566 = vadd.f32 %v548, %v564
        %567 = vrot.lane.b32.xlu0 %v446, 127
        %v568 = vpop.permute.xlu0 %567
        %569 = vrot.lane.b32.xlu0 %v447, 127
        %v570 = vpop.permute.xlu0 %569
        %vm571 = vcmp.lt.s32.totalorder %v453, 127
        %v572 = vsel %vm571, %v568, %v570
        %v573 = vsel %vm571, %v570, %v568
        %v574 = vlaneseq
        %v575 = vshrl.u32 %v574, 7
        %v576 = vsub.s32 5, %v575
        %v577 = vrot.slane %v330, %v576
        %v578 = vlaneseq
        %v579 = vshrl.u32 %v578, 7
        %v580 = vsub.s32 5, %v579
        %v581 = vrot.slane %v331, %v580
        %v582 = vmul.f32 %v572, %v577
        %v583 = vmul.f32 %v573, %v581
        %584 = vset.pattern.permute.xlu0 5
        %585 = vperm.xlu0 %584, %v326
        %v586 = vpop.permute.xlu0 %585
        %v588 = vmul.f32 %v582, %v586
        %v589 = vmul.f32 %v583, %v586
        %v590 = vadd.f32 %v565, %v588
        %v591 = vadd.f32 %v566, %v589
        %592 = vrot.lane.b32.xlu0 %v446, 113
        %v593 = vpop.permute.xlu0 %592
        %594 = vrot.lane.b32.xlu0 %v447, 113
        %v595 = vpop.permute.xlu0 %594
        %vm596 = vcmp.lt.s32.totalorder %v453, 113
        %v597 = vsel %vm596, %v593, %v595
        %v598 = vsel %vm596, %v595, %v593
        %v599 = vlaneseq
        %v600 = vshrl.u32 %v599, 7
        %v601 = vsub.s32 6, %v600
        %v602 = vrot.slane %v330, %v601
        %v603 = vlaneseq
        %v604 = vshrl.u32 %v603, 7
        %v605 = vsub.s32 6, %v604
        %v606 = vrot.slane %v331, %v605
        %v607 = vmul.f32 %v597, %v602
        %v608 = vmul.f32 %v598, %v606
        %609 = vset.pattern.permute.xlu0 6
        %610 = vperm.xlu0 %609, %v326
        %v611 = vpop.permute.xlu0 %610
        %v613 = vmul.f32 %v607, %v611
        %v614 = vmul.f32 %v608, %v611
        %v615 = vadd.f32 %v590, %v613
        %v616 = vadd.f32 %v591, %v614
        %617 = vrot.lane.b32.xlu0 %v446, 112
        %v618 = vpop.permute.xlu0 %617
        %619 = vrot.lane.b32.xlu0 %v447, 112
        %v620 = vpop.permute.xlu0 %619
        %vm621 = vcmp.lt.s32.totalorder %v453, 112
        %v622 = vsel %vm621, %v618, %v620
        %v623 = vsel %vm621, %v620, %v618
        %v624 = vlaneseq
        %v625 = vshrl.u32 %v624, 7
        %v626 = vsub.s32 7, %v625
        %v627 = vrot.slane %v330, %v626
        %v628 = vlaneseq
        %v629 = vshrl.u32 %v628, 7
        %v630 = vsub.s32 7, %v629
        %v631 = vrot.slane %v331, %v630
        %v632 = vmul.f32 %v622, %v627
        %v633 = vmul.f32 %v623, %v631
        %634 = vset.pattern.permute.xlu0 7
        %635 = vperm.xlu0 %634, %v326
        %v636 = vpop.permute.xlu0 %635
        %v638 = vmul.f32 %v632, %v636
        %v639 = vmul.f32 %v633, %v636
        %v640 = vadd.f32 %v615, %v638
        %v641 = vadd.f32 %v616, %v639
        %642 = vrot.lane.b32.xlu0 %v446, 111
        %v643 = vpop.permute.xlu0 %642
        %644 = vrot.lane.b32.xlu0 %v447, 111
        %v645 = vpop.permute.xlu0 %644
        %vm646 = vcmp.lt.s32.totalorder %v453, 111
        %v647 = vsel %vm646, %v643, %v645
        %v648 = vsel %vm646, %v645, %v643
        %v649 = vlaneseq
        %v650 = vshrl.u32 %v649, 7
        %v651 = vsub.s32 0, %v650
        %v652 = vrot.slane %v332, %v651
        %v653 = vlaneseq
        %v654 = vshrl.u32 %v653, 7
        %v655 = vsub.s32 0, %v654
        %v656 = vrot.slane %v333, %v655
        %v657 = vmul.f32 %v647, %v652
        %v658 = vmul.f32 %v648, %v656
        %659 = vset.pattern.permute.xlu0 8
        %660 = vperm.xlu0 %659, %v326
        %v661 = vpop.permute.xlu0 %660
        %v663 = vmul.f32 %v657, %v661
        %v664 = vmul.f32 %v658, %v661
        %v665 = vadd.f32 %v640, %v663
        %v666 = vadd.f32 %v641, %v664
        %668 = vset.pattern.permute.xlu0 0
        %669 = vperm.xlu0 %668, %v327
        %v670 = vpop.permute.xlu0 %669
        %v672 = vadd.f32 %v665, %v670
        %v673 = vadd.f32 %v666, %v670
        %v674 = vmax.f32 %v672, 0.0
        %v675 = vmax.f32 %v673, 0.0
        %677 = vset.pattern.permute.xlu0 0
        %678 = vperm.xlu0 %677, %v328
        %v679 = vpop.permute.xlu0 %678
        %v681 = vlaneseq
        %v682 = vshrl.u32 %v681, 7
        %v683 = vsub.s32 0, %v682
        %v684 = vrot.slane %v674, %v683
        %v685 = vlaneseq
        %v686 = vshrl.u32 %v685, 7
        %v687 = vsub.s32 0, %v686
        %v688 = vrot.slane %v675, %v687
        %v689 = vmul.f32 %v679, %v684
        %v690 = vmul.f32 %v679, %v688
        %691 = vset.pattern.permute.xlu0 1
        %692 = vperm.xlu0 %691, %v328
        %v693 = vpop.permute.xlu0 %692
        %v695 = vlaneseq
        %v696 = vshrl.u32 %v695, 7
        %v697 = vsub.s32 1, %v696
        %v698 = vrot.slane %v674, %v697
        %v699 = vlaneseq
        %v700 = vshrl.u32 %v699, 7
        %v701 = vsub.s32 1, %v700
        %v702 = vrot.slane %v675, %v701
        %v703 = vmul.f32 %v693, %v698
        %v704 = vmul.f32 %v693, %v702
        %705 = vset.pattern.permute.xlu0 2
        %706 = vperm.xlu0 %705, %v328
        %v707 = vpop.permute.xlu0 %706
        %v709 = vlaneseq
        %v710 = vshrl.u32 %v709, 7
        %v711 = vsub.s32 2, %v710
        %v712 = vrot.slane %v674, %v711
        %v713 = vlaneseq
        %v714 = vshrl.u32 %v713, 7
        %v715 = vsub.s32 2, %v714
        %v716 = vrot.slane %v675, %v715
        %v717 = vmul.f32 %v707, %v712
        %v718 = vmul.f32 %v707, %v716
        %719 = vset.pattern.permute.xlu0 3
        %720 = vperm.xlu0 %719, %v328
        %v721 = vpop.permute.xlu0 %720
        %v723 = vlaneseq
        %v724 = vshrl.u32 %v723, 7
        %v725 = vsub.s32 3, %v724
        %v726 = vrot.slane %v674, %v725
        %v727 = vlaneseq
        %v728 = vshrl.u32 %v727, 7
        %v729 = vsub.s32 3, %v728
        %v730 = vrot.slane %v675, %v729
        %v731 = vmul.f32 %v721, %v726
        %v732 = vmul.f32 %v721, %v730
        %733 = vset.pattern.permute.xlu0 4
        %734 = vperm.xlu0 %733, %v328
        %v735 = vpop.permute.xlu0 %734
        %v737 = vlaneseq
        %v738 = vshrl.u32 %v737, 7
        %v739 = vsub.s32 4, %v738
        %v740 = vrot.slane %v674, %v739
        %v741 = vlaneseq
        %v742 = vshrl.u32 %v741, 7
        %v743 = vsub.s32 4, %v742
        %v744 = vrot.slane %v675, %v743
        %v745 = vmul.f32 %v735, %v740
        %v746 = vmul.f32 %v735, %v744
        %747 = vset.pattern.permute.xlu0 5
        %748 = vperm.xlu0 %747, %v328
        %v749 = vpop.permute.xlu0 %748
        %v751 = vlaneseq
        %v752 = vshrl.u32 %v751, 7
        %v753 = vsub.s32 5, %v752
        %v754 = vrot.slane %v674, %v753
        %v755 = vlaneseq
        %v756 = vshrl.u32 %v755, 7
        %v757 = vsub.s32 5, %v756
        %v758 = vrot.slane %v675, %v757
        %v759 = vmul.f32 %v749, %v754
        %v760 = vmul.f32 %v749, %v758
        %761 = vset.pattern.permute.xlu0 6
        %762 = vperm.xlu0 %761, %v328
        %v763 = vpop.permute.xlu0 %762
        %v765 = vlaneseq
        %v766 = vshrl.u32 %v765, 7
        %v767 = vsub.s32 6, %v766
        %v768 = vrot.slane %v674, %v767
        %v769 = vlaneseq
        %v770 = vshrl.u32 %v769, 7
        %v771 = vsub.s32 6, %v770
        %v772 = vrot.slane %v675, %v771
        %v773 = vmul.f32 %v763, %v768
        %v774 = vmul.f32 %v763, %v772
        %775 = vset.pattern.permute.xlu0 7
        %776 = vperm.xlu0 %775, %v328
        %v777 = vpop.permute.xlu0 %776
        %v779 = vlaneseq
        %v780 = vshrl.u32 %v779, 7
        %v781 = vsub.s32 7, %v780
        %v782 = vrot.slane %v674, %v781
        %v783 = vlaneseq
        %v784 = vshrl.u32 %v783, 7
        %v785 = vsub.s32 7, %v784
        %v786 = vrot.slane %v675, %v785
        %v787 = vmul.f32 %v777, %v782
        %v788 = vmul.f32 %v777, %v786
        %790 = vset.pattern.permute.xlu0 0
        %791 = vperm.xlu0 %790, %v329
        %v792 = vpop.permute.xlu0 %791
        %v794 = vadd.f32 %v792, %v689
        %v795 = vadd.f32 %v792, %v690
        %v796 = vadd.f32 %v703, %v717
        %v797 = vadd.f32 %v704, %v718
        %v798 = vadd.f32 %v731, %v745
        %v799 = vadd.f32 %v732, %v746
        %v800 = vadd.f32 %v759, %v773
        %v801 = vadd.f32 %v760, %v774
        %v802 = vadd.f32 %v794, %v796
        %v803 = vadd.f32 %v795, %v797
        %v804 = vadd.f32 %v798, %v800
        %v805 = vadd.f32 %v799, %v801
        %v806 = vadd.f32 %v802, %v804
        %v807 = vadd.f32 %v803, %v805
        %v808 = vadd.f32 %v806, %v787
        %v809 = vadd.f32 %v807, %v788
        %v810 = vcombine.high %v334, %v334
        %v812 = vadd.f32 %v808, %v334
        %v813 = vadd.f32 %v809, %v810
        %v816 = vcombine.low %v812, %v813
        %818 = vst [vmem:[%s321] sm:$0xff] %v816
        %s819 = sand.u32 %s206, 1
        %s820 = scalar_lea.sflag [#allocation4], %s819
        %s821 = sand.u32 %s206, 1
        %s822 = smul.addr %s821, 8
        %s823 = scalar_lea.vmem [#allocation5], %s822
        // Predicated region
        $region57: #{tpu_custom_call.1} parent=51 // pred_check
          %p824 = pneg %p216
        $region58: #{tpu_custom_call.1} parent=51 // pred_check_branch
          %826 = sbr.rel (%p824) target = $region60
        $region59: #{tpu_custom_call.1} parent=51 // pred_region
          %s827 = smul.u32 2, %s25
          %s829 = ssub.s32 128, 128
          %830 = vsyncadd %s820, %s829
          %s831 = smul.addr %s827, 64
          %s832 = scalar_lea.hbm %s8, %s831
          %s834 = sshll.u32 %s823, 4
          %s835 = int_to_ptr.vmem [resolvable:$true] %s834
          %837 = dma.vmem_to_hbm [thread:$0]  %s835, 128, %s832, %s820
        $region60: #{tpu_custom_call.1} parent=51 // pred_fallthru
          _
      $region52: #{tpu_custom_call.1} parent=5 // pred_fallthru
        _
      %p838 = scmp.le.s32.totalorder 2, %s20
      // Predicated region
      $region61: #{tpu_custom_call.1} parent=5 // pred_check
        %p839 = pneg %p838
      $region62: #{tpu_custom_call.1} parent=5 // pred_check_branch
        %841 = sbr.rel (%p839) target = $region64
      $region63: #{tpu_custom_call.1} parent=5 // pred_region
        %s842 = ssub.s32 %s20, 2
        // Predicated region
        $region65: #{tpu_custom_call.1} parent=63 // pred_check
          %p843 = pneg %p222
        $region66: #{tpu_custom_call.1} parent=63 // pred_check_branch
          %845 = sbr.rel (%p843) target = $region68
        $region67: #{tpu_custom_call.1} parent=63 // pred_region
          %s846 = sand.u32 %s207, 1
          %s847 = scalar_lea.sflag [#allocation4], %s846
          %s848 = sand.u32 %s207, 1
          %s849 = smul.addr %s848, 8
          %s850 = scalar_lea.vmem [#allocation5], %s849
          %851 = dma.done %s847, 128
        $region68: #{tpu_custom_call.1} parent=63 // pred_fallthru
          _
      $region64: #{tpu_custom_call.1} parent=5 // pred_fallthru
        _
    $region6: #{tpu_custom_call.1} parent=1 // loop_footer
      %s24 = sadd.s32 1, %s20
    $region7: #{tpu_custom_call.1} parent=1 // loop_footer_branch
      %19 = sbr.rel target = $region3
    $region8: #{tpu_custom_call.1} parent=1 // loop_exit
      _
    %852 = vsyncpa [#allocation3], 1
    %s853 = scalar_lea.sflag [#allocation3], 1
    %854 = vsyncpa %s853, 1
    %855 = vsyncpa [#allocation4], 1
    %s856 = scalar_lea.sflag [#allocation4], 1
    %857 = vsyncpa %s856, 1

</llo_original>
